<compile_context>
chip_gen: v6e
topology: v6e:2x2x1
jax: 0.10.0
libtpu: 0.0.40
codegen_flags: <defaults>
</compile_context>

<pallas_src>
import math

import jax
import jax.numpy as jnp
from jax.experimental import pallas as pl
from jax.experimental.pallas import tpu as pltpu


def fused_relu_kernel(scale_ref, x_ref, bias_ref, res_ref, out_ref):
    # scale_ref: SMEM (1,) f32 scalar; bias_ref: resident (1, block_cols) f32.
    s = scale_ref[0]
    y = (x_ref[...].astype(jnp.float32) * s
         + bias_ref[...]
         + res_ref[...].astype(jnp.float32))
    out_ref[...] = jnp.maximum(y, 0.0).astype(out_ref.dtype)


def _round_down(v, m):
    return max(m, (v // m) * m)


def _vmem_capacity_bytes():
    try:
        cap = getattr(pltpu.get_tpu_info(), "vmem_capacity_bytes", None)
        if cap:
            return int(cap)
    except Exception:
        pass
    return 64 << 20  # conservative v7x-class fallback


def fused_relu(x, scale, bias, residual, *, block_rows=None, block_cols=None):
    """y = relu(x * scale + bias + residual).

    x, residual: (M, N) float32 or bfloat16
    scale:       scalar
    bias:        (N,), broadcast over rows
    """
    M, N = x.shape
    assert residual.shape == (M, N)
    assert bias.shape == (N,)

    dtype = x.dtype
    itemsize = jnp.dtype(dtype).itemsize
    # Sublane packing multiple: 8 for f32, 16 for bf16, 32 for int8/fp8.
    sub_mult = 8 * max(1, 4 // itemsize)

    # --- lane-dense repack for narrow / non-128-multiple feature axes -------
    # Elementwise op with a periodic bias, so reshaping to a 128-multiple
    # width is pure layout plumbing; it turns masked partial stores into full
    # lane-dense vst.
    if (N % 128 != 0) and block_rows is None and block_cols is None:
        W = (N * 128) // math.gcd(N, 128)          # lcm(N, 128)
        reps = W // N
        if M % reps == 0 and W <= 32768:
            xp = x.reshape(M // reps, W)
            rp = residual.reshape(M // reps, W)
            bp = jnp.tile(jnp.asarray(bias, dtype=jnp.float32), reps)
            out = fused_relu(xp, scale, bp, rp)
            return out.reshape(M, N)

    # --- device-aware per-tile byte budget -----------------------------------
    vmem_cap = _vmem_capacity_bytes()
    # Double-buffered footprint is ~6x the tile; leave ~24 MiB headroom.
    target_tile_bytes = max(1 << 20, min(8 << 20, (vmem_cap - (24 << 20)) // 6))
    target_tile_bytes = (target_tile_bytes // (1 << 20)) * (1 << 20)

    # --- lane (feature) tiling: prefer full-N blocks -------------------------
    if block_cols is None:
        if N * itemsize * sub_mult <= target_tile_bytes:
            block_cols = N                          # full-N: contiguous DMAs
        else:
            block_cols = _round_down(target_tile_bytes // (itemsize * sub_mult), 128)
            block_cols = min(block_cols, N)
    else:
        block_cols = min(int(block_cols), N)
        if block_cols < N:
            block_cols = _round_down(block_cols, 128)

    # --- row tiling ----------------------------------------------------------
    if block_rows is None:
        block_rows = max(sub_mult, target_tile_bytes // (block_cols * itemsize))
    else:
        block_rows = max(int(block_rows), 1)
    if block_rows >= M:
        block_rows = M                              # full dim is always legal
    else:
        block_rows = _round_down(block_rows, sub_mult)

    # --- VMEM limit: footprint-derived, device-capped -------------------------
    tile_bytes = block_rows * block_cols * itemsize
    bias_bytes = block_cols * 4
    # 2 bufs x (x + residual) + 2 x out + bias (resident).
    footprint = 6 * tile_bytes + 3 * bias_bytes
    vmem_limit = footprint + (8 << 20)
    vmem_limit = max(vmem_limit, 16 << 20)
    vmem_limit = min(vmem_limit, vmem_cap)
    vmem_limit = int(max(vmem_limit, footprint))    # never clamp below footprint

    scale_arr = jnp.asarray(scale, dtype=jnp.float32).reshape((1,))
    bias2d = jnp.asarray(bias, dtype=jnp.float32).reshape((1, N))

    n_row = pl.cdiv(M, block_rows)
    n_col = pl.cdiv(N, block_cols)

    if n_col == 1:
        grid = (n_row,)
        x_spec = pl.BlockSpec((block_rows, block_cols), lambda i: (i, 0))
        b_spec = pl.BlockSpec((1, block_cols), lambda i: (0, 0))
        o_spec = pl.BlockSpec((block_rows, block_cols), lambda i: (i, 0))
        dims = ("parallel",)
    else:
        # Column axis outermost so the bias block index only changes on the
        # slow axis; rows stream on the innermost axis.
        grid = (n_col, n_row)
        x_spec = pl.BlockSpec((block_rows, block_cols), lambda j, i: (i, j))
        b_spec = pl.BlockSpec((1, block_cols), lambda j, i: (0, j))
        o_spec = pl.BlockSpec((block_rows, block_cols), lambda j, i: (i, j))
        dims = ("parallel", "parallel")

    return pl.pallas_call(
        fused_relu_kernel,
        out_shape=jax.ShapeDtypeStruct((M, N), dtype),
        grid=grid,
        in_specs=[
            pl.BlockSpec(memory_space=pltpu.MemorySpace.SMEM),  # scale scalar
            x_spec,                                             # x
            b_spec,                                             # bias (f32, resident)
            x_spec,                                             # residual
        ],
        out_specs=o_spec,
        compiler_params=pltpu.CompilerParams(
            dimension_semantics=dims,
            vmem_limit_bytes=vmem_limit,
        ),
    )(scale_arr, x, bias2d, residual)


if __name__ == "__main__":
    key = jax.random.PRNGKey(0)
    k1, k2, k3 = jax.random.split(key, 3)
    scale = 0.5

    # Test 1: small f32 case, single (full-array) block.
    M, N = 64, 256
    x = jax.random.normal(k1, (M, N), dtype=jnp.float32)
    residual = jax.random.normal(k2, (M, N), dtype=jnp.float32)
    bias = jax.random.normal(k3, (N,), dtype=jnp.float32)

    out = jax.block_until_ready(fused_relu(x, scale, bias, residual))
    ref = jnp.maximum(x * scale + bias[None, :] + residual, 0.0)
    assert out.shape == ref.shape and out.dtype == ref.dtype
    assert jnp.allclose(out, ref, atol=1e-6, rtol=1e-6)

    # Test 2: M not divisible by the tile -> pl.cdiv grid, partial edge block.
    M2, N2 = 300, 384
    x2 = jax.random.normal(k1, (M2, N2), dtype=jnp.float32)
    r2 = jax.random.normal(k2, (M2, N2), dtype=jnp.float32)
    b2 = jax.random.normal(k3, (N2,), dtype=jnp.float32)

    out2 = jax.block_until_ready(fused_relu(x2, scale, b2, r2, block_rows=128))
    ref2 = jnp.maximum(x2 * scale + b2[None, :] + r2, 0.0)
    assert jnp.allclose(out2, ref2, atol=1e-6, rtol=1e-6)

    # Test 3: bf16 I/O (half the HBM bytes), f32 math + f32 bias inside.
    xb = x.astype(jnp.bfloat16)
    rb = residual.astype(jnp.bfloat16)
    bb = bias.astype(jnp.bfloat16)

    outb = jax.block_until_ready(fused_relu(xb, scale, bb, rb))
    refb = jnp.maximum(
        xb.astype(jnp.float32) * scale
        + bb.astype(jnp.float32)[None, :]
        + rb.astype(jnp.float32),
        0.0,
    ).astype(jnp.bfloat16)
    assert outb.dtype == jnp.bfloat16
    assert jnp.allclose(outb.astype(jnp.float32), refb.astype(jnp.float32),
                        atol=1e-2, rtol=1e-2)

    # Test 4: narrow, non-128-multiple feature axis -> lane-dense repack path.
    M4, N4 = 64, 80
    x4 = jax.random.normal(k1, (M4, N4), dtype=jnp.float32)
    r4 = jax.random.normal(k2, (M4, N4), dtype=jnp.float32)
    b4 = jax.random.normal(k3, (N4,), dtype=jnp.float32)

    out4 = jax.block_until_ready(fused_relu(x4, scale, b4, r4))
    ref4 = jnp.maximum(x4 * scale + b4[None, :] + r4, 0.0)
    assert out4.shape == ref4.shape
    assert jnp.allclose(out4, ref4, atol=1e-6, rtol=1e-6)

    print("KERNEL_OK")
</pallas_src>

<mosaic_0001>
module attributes {stable_mosaic.version = 11 : i64} {
  func.func @fused_relu_kernel(%arg0: i32, %arg1: memref<1xf32, #tpu.memory_space<smem>>, %arg2: memref<64x256xf32, #tpu.memory_space<vmem>>, %arg3: memref<1x256xf32, #tpu.memory_space<vmem>>, %arg4: memref<64x256xf32, #tpu.memory_space<vmem>>, %arg5: memref<64x256xf32, #tpu.memory_space<vmem>>) attributes {dimension_semantics = [#tpu.dimension_semantics<parallel>], iteration_bounds = array<i64: 1>, scalar_prefetch = 0 : i64, scratch_operands = 0 : i64, tpu.core_type = #tpu.core_type<tc>, window_params = [{transform_indices = @transform_0, window_bounds = array<i64: 1>}, {transform_indices = @transform_1, window_bounds = array<i64: 64, 256>}, {pipeline_mode = #tpu.pipeline_mode<synchronous>, transform_indices = @transform_2, window_bounds = array<i64: 1, 256>}, {transform_indices = @transform_3, window_bounds = array<i64: 64, 256>}, {transform_indices = @transform_4, window_bounds = array<i64: 64, 256>}]} {
    %c0 = arith.constant 0 : index
    %0 = memref.load %arg1[%c0] : memref<1xf32, #tpu.memory_space<smem>>
    %c0_0 = arith.constant 0 : index
    %c0_1 = arith.constant 0 : index
    %1 = vector.load %arg2[%c0_0, %c0_1] : memref<64x256xf32, #tpu.memory_space<vmem>>, vector<64x256xf32>
    %2 = vector.broadcast %0 : f32 to vector<64x256xf32>
    %3 = arith.mulf %1, %2 : vector<64x256xf32>
    %c0_2 = arith.constant 0 : index
    %c0_3 = arith.constant 0 : index
    %4 = vector.load %arg3[%c0_2, %c0_3] : memref<1x256xf32, #tpu.memory_space<vmem>>, vector<1x256xf32>
    %5 = vector.broadcast %4 : vector<1x256xf32> to vector<64x256xf32>
    %6 = arith.addf %3, %5 : vector<64x256xf32>
    %c0_4 = arith.constant 0 : index
    %c0_5 = arith.constant 0 : index
    %7 = vector.load %arg4[%c0_4, %c0_5] : memref<64x256xf32, #tpu.memory_space<vmem>>, vector<64x256xf32>
    %8 = arith.addf %6, %7 : vector<64x256xf32>
    %cst = arith.constant 0.000000e+00 : f32
    %9 = vector.broadcast %cst : f32 to vector<64x256xf32>
    %10 = arith.maximumf %8, %9 : vector<64x256xf32>
    %c0_6 = arith.constant 0 : index
    %c0_7 = arith.constant 0 : index
    %11 = vector.load %arg5[%c0_6, %c0_7] : memref<64x256xf32, #tpu.memory_space<vmem>>, vector<64x256xf32>
    tpu.vector_store %arg5[%c0_6, %c0_7], %10 {strides = array<i32>} : memref<64x256xf32, #tpu.memory_space<vmem>>, vector<64x256xf32>,
    return
  }
  func.func @transform_0(%arg0: i32) -> i32 {
    %c0_i32 = arith.constant 0 : i32
    %c0_i32_0 = arith.constant 0 : i32
    return %c0_i32 : i32
  }
  func.func @transform_1(%arg0: i32) -> (i32, i32) {
    %c0_i32 = arith.constant 0 : i32
    %c0_i32_0 = arith.constant 0 : i32
    return %arg0, %c0_i32 : i32, i32
  }
  func.func @transform_2(%arg0: i32) -> (i32, i32) {
    %c0_i32 = arith.constant 0 : i32
    %c0_i32_0 = arith.constant 0 : i32
    %c0_i32_1 = arith.constant 0 : i32
    return %c0_i32, %c0_i32_0 : i32, i32
  }
  func.func @transform_3(%arg0: i32) -> (i32, i32) {
    %c0_i32 = arith.constant 0 : i32
    %c0_i32_0 = arith.constant 0 : i32
    return %arg0, %c0_i32 : i32, i32
  }
  func.func @transform_4(%arg0: i32) -> (i32, i32) {
    %c0_i32 = arith.constant 0 : i32
    %c0_i32_0 = arith.constant 0 : i32
    return %arg0, %c0_i32 : i32, i32
  }
}

</mosaic_0001>

<llo_original>
// kernel: tpu_custom_call.1
$region0: #{tpu_custom_call.1}
  #allocation0 [shape = 'u32[]', space=smem, size = 0x4, offset = 0x4, fixed_abs, tag = 'smem constant byte address 0x4 - core index']
  #allocation1 [shape = 'u32[144,128]{1,0:T(1,128)}', space=vmem, size = 0x12000, scoped, tag = 'internal scratch']
  #allocation2 [shape = 'f32[1]{0:T(128)S(6)}', space=smem, size = 0x200, scoped, tag = 'scoped memory for tpu_custom_call.1']
  %s0 = inlined_call_operand.<no memory space> [shape: f32[1], index: 0, kind: input, shape index: {}]
  %s1 = inlined_call_operand.hbm [shape: f32[64,256], index: 1, kind: input, shape index: {}]
  %s2 = inlined_call_operand.vmem [shape: f32[1,256], index: 2, kind: input, shape index: {}]
  %s3 = inlined_call_operand.hbm [shape: f32[64,256], index: 3, kind: input, shape index: {}]
  %s4 = inlined_call_operand.hbm [shape: f32[64,256], index: 4, kind: output, shape index: {}]
  %s5 = sld [smem:[#allocation0]]
  $region34: #{tpu_custom_call.1} parent=0
    _
  %s7 = ssub.s32 1, %s5
  %s8 = scalar_select 0, %s7, %s5
  %9 = sst [smem:[#allocation2]] %s0
  $region1: #{tpu_custom_call.1} parent=0
    #allocation3 [shape = 'u8[65536]{0}', space=vmem, size = 0x10000, scoped, tag = 'input window, operand 1, single buffered']
    #allocation4 [shape = 's32[1]{0}', space=sflag, size = 0x4, scoped, tag = 'scoped memory for tpu_custom_call.1']
    #allocation5 [shape = 's32[1]{0}', space=sflag, size = 0x4, scoped, tag = 'scoped memory for tpu_custom_call.1']
    #allocation6 [shape = 'u8[65536]{0}', space=vmem, size = 0x10000, scoped, tag = 'input window, operand 3, single buffered']
    #allocation7 [shape = 's32[1]{0}', space=sflag, size = 0x4, scoped, tag = 'scoped memory for tpu_custom_call.1']
    #allocation8 [shape = 'u8[65536]{0}', space=vmem, size = 0x10000, scoped, tag = 'output window, operand 0, single buffered']
    %10 = vsyncpa [#allocation4], 0
    %11 = vsyncpa [#allocation7], 0
    %12 = vsyncpa [#allocation5], 0
    // Predicated region
    $region2: #{tpu_custom_call.1} parent=1 // pred_check
      _
    $region3: #{tpu_custom_call.1} parent=1 // pred_check_branch
      %14 = sbr.rel (0) target = $region5
    $region4: #{tpu_custom_call.1} parent=1 // pred_region
      _
    $region5: #{tpu_custom_call.1} parent=1 // pred_fallthru
      _
    // Predicated region
    $region6: #{tpu_custom_call.1} parent=1 // pred_check
      _
    $region7: #{tpu_custom_call.1} parent=1 // pred_check_branch
      %16 = sbr.rel (0) target = $region9
    $region8: #{tpu_custom_call.1} parent=1 // pred_region
      %s18 = ssub.s32 2048, 2048
      %19 = vsyncadd [#allocation4], %s18
      %s20 = sshll.u32 [#allocation3], 4
      %s21 = int_to_ptr.vmem [resolvable:$true] %s20
      %26 = dma.hbm_to_vmem [thread:$0]  %s1, 2048, %s21, [#allocation4], 256, 256, 16
    $region9: #{tpu_custom_call.1} parent=1 // pred_fallthru
      _
    // Predicated region
    $region10: #{tpu_custom_call.1} parent=1 // pred_check
      _
    $region11: #{tpu_custom_call.1} parent=1 // pred_check_branch
      %28 = sbr.rel (0) target = $region13
    $region12: #{tpu_custom_call.1} parent=1 // pred_region
      _
    $region13: #{tpu_custom_call.1} parent=1 // pred_fallthru
      _
    // Predicated region
    $region14: #{tpu_custom_call.1} parent=1 // pred_check
      _
    $region15: #{tpu_custom_call.1} parent=1 // pred_check_branch
      %30 = sbr.rel (0) target = $region17
    $region16: #{tpu_custom_call.1} parent=1 // pred_region
      %s32 = ssub.s32 2048, 2048
      %33 = vsyncadd [#allocation7], %s32
      %s34 = sshll.u32 [#allocation6], 4
      %s35 = int_to_ptr.vmem [resolvable:$true] %s34
      %40 = dma.hbm_to_vmem [thread:$0]  %s3, 2048, %s35, [#allocation7], 256, 256, 16
    $region17: #{tpu_custom_call.1} parent=1 // pred_fallthru
      _
    // Predicated region
    $region18: #{tpu_custom_call.1} parent=1 // pred_check
      _
    $region19: #{tpu_custom_call.1} parent=1 // pred_check_branch
      %42 = sbr.rel (0) target = $region21
    $region20: #{tpu_custom_call.1} parent=1 // pred_region
      %43 = dma.done [#allocation4], 2048
    $region21: #{tpu_custom_call.1} parent=1 // pred_fallthru
      _
    // Predicated region
    $region22: #{tpu_custom_call.1} parent=1 // pred_check
      _
    $region23: #{tpu_custom_call.1} parent=1 // pred_check_branch
      %45 = sbr.rel (0) target = $region25
    $region24: #{tpu_custom_call.1} parent=1 // pred_region
      %46 = dma.done [#allocation7], 2048
    $region25: #{tpu_custom_call.1} parent=1 // pred_fallthru
      _
    %s47 = sld [smem:[#allocation2]]
    %v48 = vld [vmem:[#allocation3] sm:$0xff]
    %v49 = vld [vmem:[#allocation3 + $0x8] sm:$0xff]
    %v50 = vld [vmem:[#allocation3 + $0x10] sm:$0xff]
    %v51 = vld [vmem:[#allocation3 + $0x18] sm:$0xff]
    %v52 = vld [vmem:[#allocation3 + $0x20] sm:$0xff]
    %v53 = vld [vmem:[#allocation3 + $0x28] sm:$0xff]
    %v54 = vld [vmem:[#allocation3 + $0x30] sm:$0xff]
    %v55 = vld [vmem:[#allocation3 + $0x38] sm:$0xff]
    %v56 = vld [vmem:[#allocation3 + $0x40] sm:$0xff]
    %v57 = vld [vmem:[#allocation3 + $0x48] sm:$0xff]
    %v58 = vld [vmem:[#allocation3 + $0x50] sm:$0xff]
    %v59 = vld [vmem:[#allocation3 + $0x58] sm:$0xff]
    %v60 = vld [vmem:[#allocation3 + $0x60] sm:$0xff]
    %v61 = vld [vmem:[#allocation3 + $0x68] sm:$0xff]
    %v62 = vld [vmem:[#allocation3 + $0x70] sm:$0xff]
    %v63 = vld [vmem:[#allocation3 + $0x78] sm:$0xff]
    %v64 = vstv %s47
    %v65 = vmul.f32 %v48, %v64
    %v66 = vmul.f32 %v49, %v64
    %v67 = vmul.f32 %v50, %v64
    %v68 = vmul.f32 %v51, %v64
    %v69 = vmul.f32 %v52, %v64
    %v70 = vmul.f32 %v53, %v64
    %v71 = vmul.f32 %v54, %v64
    %v72 = vmul.f32 %v55, %v64
    %v73 = vmul.f32 %v56, %v64
    %v74 = vmul.f32 %v57, %v64
    %v75 = vmul.f32 %v58, %v64
    %v76 = vmul.f32 %v59, %v64
    %v77 = vmul.f32 %v60, %v64
    %v78 = vmul.f32 %v61, %v64
    %v79 = vmul.f32 %v62, %v64
    %v80 = vmul.f32 %v63, %v64
    %v81 = vld [vmem:[%s2] sm:$0x3]
    %v83 = vlaneseq
    %v84 = vshrl.u32 %v83, 7
    %v85 = vsub.s32 0, %v84
    %v86 = vrot.slane %v81, %v85
    %v87 = vlaneseq
    %v88 = vshrl.u32 %v87, 7
    %v89 = vsub.s32 1, %v88
    %v90 = vrot.slane %v81, %v89
    %v93 = vadd.f32 %v65, %v86
    %v94 = vadd.f32 %v66, %v90
    %v95 = vadd.f32 %v67, %v86
    %v96 = vadd.f32 %v68, %v90
    %v97 = vadd.f32 %v69, %v86
    %v98 = vadd.f32 %v70, %v90
    %v99 = vadd.f32 %v71, %v86
    %v100 = vadd.f32 %v72, %v90
    %v101 = vadd.f32 %v73, %v86
    %v102 = vadd.f32 %v74, %v90
    %v103 = vadd.f32 %v75, %v86
    %v104 = vadd.f32 %v76, %v90
    %v105 = vadd.f32 %v77, %v86
    %v106 = vadd.f32 %v78, %v90
    %v107 = vadd.f32 %v79, %v86
    %v108 = vadd.f32 %v80, %v90
    %v109 = vld [vmem:[#allocation6] sm:$0xff]
    %v110 = vld [vmem:[#allocation6 + $0x8] sm:$0xff]
    %v111 = vld [vmem:[#allocation6 + $0x10] sm:$0xff]
    %v112 = vld [vmem:[#allocation6 + $0x18] sm:$0xff]
    %v113 = vld [vmem:[#allocation6 + $0x20] sm:$0xff]
    %v114 = vld [vmem:[#allocation6 + $0x28] sm:$0xff]
    %v115 = vld [vmem:[#allocation6 + $0x30] sm:$0xff]
    %v116 = vld [vmem:[#allocation6 + $0x38] sm:$0xff]
    %v117 = vld [vmem:[#allocation6 + $0x40] sm:$0xff]
    %v118 = vld [vmem:[#allocation6 + $0x48] sm:$0xff]
    %v119 = vld [vmem:[#allocation6 + $0x50] sm:$0xff]
    %v120 = vld [vmem:[#allocation6 + $0x58] sm:$0xff]
    %v121 = vld [vmem:[#allocation6 + $0x60] sm:$0xff]
    %v122 = vld [vmem:[#allocation6 + $0x68] sm:$0xff]
    %v123 = vld [vmem:[#allocation6 + $0x70] sm:$0xff]
    %v124 = vld [vmem:[#allocation6 + $0x78] sm:$0xff]
    %v125 = vadd.f32 %v93, %v109
    %v126 = vadd.f32 %v94, %v110
    %v127 = vadd.f32 %v95, %v111
    %v128 = vadd.f32 %v96, %v112
    %v129 = vadd.f32 %v97, %v113
    %v130 = vadd.f32 %v98, %v114
    %v131 = vadd.f32 %v99, %v115
    %v132 = vadd.f32 %v100, %v116
    %v133 = vadd.f32 %v101, %v117
    %v134 = vadd.f32 %v102, %v118
    %v135 = vadd.f32 %v103, %v119
    %v136 = vadd.f32 %v104, %v120
    %v137 = vadd.f32 %v105, %v121
    %v138 = vadd.f32 %v106, %v122
    %v139 = vadd.f32 %v107, %v123
    %v140 = vadd.f32 %v108, %v124
    %v141 = vmax.f32 %v125, 0.0
    %v142 = vmax.f32 %v126, 0.0
    %v143 = vmax.f32 %v127, 0.0
    %v144 = vmax.f32 %v128, 0.0
    %v145 = vmax.f32 %v129, 0.0
    %v146 = vmax.f32 %v130, 0.0
    %v147 = vmax.f32 %v131, 0.0
    %v148 = vmax.f32 %v132, 0.0
    %v149 = vmax.f32 %v133, 0.0
    %v150 = vmax.f32 %v134, 0.0
    %v151 = vmax.f32 %v135, 0.0
    %v152 = vmax.f32 %v136, 0.0
    %v153 = vmax.f32 %v137, 0.0
    %v154 = vmax.f32 %v138, 0.0
    %v155 = vmax.f32 %v139, 0.0
    %v156 = vmax.f32 %v140, 0.0
    %157 = vst [vmem:[#allocation8] sm:$0xff] %v141
    %158 = vst [vmem:[#allocation8 + $0x8] sm:$0xff] %v142
    %159 = vst [vmem:[#allocation8 + $0x10] sm:$0xff] %v143
    %160 = vst [vmem:[#allocation8 + $0x18] sm:$0xff] %v144
    %161 = vst [vmem:[#allocation8 + $0x20] sm:$0xff] %v145
    %162 = vst [vmem:[#allocation8 + $0x28] sm:$0xff] %v146
    %163 = vst [vmem:[#allocation8 + $0x30] sm:$0xff] %v147
    %164 = vst [vmem:[#allocation8 + $0x38] sm:$0xff] %v148
    %165 = vst [vmem:[#allocation8 + $0x40] sm:$0xff] %v149
    %166 = vst [vmem:[#allocation8 + $0x48] sm:$0xff] %v150
    %167 = vst [vmem:[#allocation8 + $0x50] sm:$0xff] %v151
    %168 = vst [vmem:[#allocation8 + $0x58] sm:$0xff] %v152
    %169 = vst [vmem:[#allocation8 + $0x60] sm:$0xff] %v153
    %170 = vst [vmem:[#allocation8 + $0x68] sm:$0xff] %v154
    %171 = vst [vmem:[#allocation8 + $0x70] sm:$0xff] %v155
    %172 = vst [vmem:[#allocation8 + $0x78] sm:$0xff] %v156
    // Predicated region
    $region26: #{tpu_custom_call.1} parent=1 // pred_check
      _
    $region27: #{tpu_custom_call.1} parent=1 // pred_check_branch
      %174 = sbr.rel (0) target = $region29
    $region28: #{tpu_custom_call.1} parent=1 // pred_region
      %s176 = ssub.s32 2048, 2048
      %177 = vsyncadd [#allocation5], %s176
      %s178 = sshll.u32 [#allocation8], 4
      %s179 = int_to_ptr.vmem [resolvable:$true] %s178
      %184 = dma.vmem_to_hbm [thread:$0]  %s179, 2048, %s4, [#allocation5], 256, 256, 16
    $region29: #{tpu_custom_call.1} parent=1 // pred_fallthru
      _
    // Predicated region
    $region30: #{tpu_custom_call.1} parent=1 // pred_check
      _
    $region31: #{tpu_custom_call.1} parent=1 // pred_check_branch
      %186 = sbr.rel (0) target = $region33
    $region32: #{tpu_custom_call.1} parent=1 // pred_region
      %187 = dma.done [#allocation5], 2048
    $region33: #{tpu_custom_call.1} parent=1 // pred_fallthru
      _
    %188 = vsyncpa [#allocation4], 1
    %189 = vsyncpa [#allocation7], 1
    %190 = vsyncpa [#allocation5], 1

</llo_original>
